<compile_context>
chip_gen: v7x
topology: tpu7x:2x2x1
jax: 0.10.0
libtpu: 0.0.40
codegen_flags: <defaults>
</compile_context>

<pallas_src>
import functools

import jax
import jax.numpy as jnp
from jax.experimental import pallas as pl
from jax.experimental.pallas import tpu as pltpu

HIDDEN = 128  # fc1 output width, fixed by the PyTorch module


def _round_up(n, m):
    return ((n + m - 1) // m) * m


# --------------------- fused MLP kernel: fc1 + ReLU + fc2 ---------------------
def _mlp_fused_kernel(x_ref, w1_ref, b1_ref, w2_ref, b2_ref, out_ref):
    # x_ref:  (tb, I)       batch tile (f32 in HBM; cast to bf16 for the MXU)
    # w1_ref: (I, 128)      fc1 weight, pre-transposed, bf16 (VMEM-resident)
    # b1_ref: (1, 128)      fc1 bias, f32
    # w2_ref: (128, Cpad)   fc2 weight, pre-transposed + lane-padded, bf16
    # b2_ref: (1, Cpad)     fc2 bias, lane-padded, f32
    x = x_ref[...].astype(jnp.bfloat16)
    h = jnp.dot(x, w1_ref[...], preferred_element_type=jnp.float32) + b1_ref[...]
    h = jnp.maximum(h, 0.0)  # ReLU in f32 on the whole (tb,128) slab (VPU)
    y = (
        jnp.dot(h.astype(jnp.bfloat16), w2_ref[...],
                preferred_element_type=jnp.float32)
        + b2_ref[...]
    )
    out_ref[...] = y.astype(out_ref.dtype)


def _mlp_forward(x_in, w1_t, b1, w2_t_pad, b2_pad, tb, nb):
    B_in, I = x_in.shape
    H = w1_t.shape[1]
    C_pad = w2_t_pad.shape[1]
    cost = pl.CostEstimate(
        flops=2 * B_in * (I * H + H * C_pad),
        transcendentals=0,
        bytes_accessed=(B_in * I * x_in.dtype.itemsize   # stream x in
                        + B_in * C_pad * 4                # stream out
                        + I * H * 2 + H * C_pad * 2       # bf16 weights
                        + (H + C_pad) * 4),               # f32 biases
    )
    return pl.pallas_call(
        _mlp_fused_kernel,
        out_shape=jax.ShapeDtypeStruct((B_in, C_pad), jnp.float32),
        grid_spec=pltpu.PrefetchScalarGridSpec(
            num_scalar_prefetch=0,
            grid=(nb,),
            in_specs=[
                pl.BlockSpec((tb, I), lambda i: (i, 0)),      # batch tile of x
                pl.BlockSpec((I, H), lambda i: (0, 0)),       # fc1 W^T (resident)
                pl.BlockSpec((1, H), lambda i: (0, 0)),       # fc1 b
                pl.BlockSpec((H, C_pad), lambda i: (0, 0)),   # fc2 W^T (resident)
                pl.BlockSpec((1, C_pad), lambda i: (0, 0)),   # fc2 b
            ],
            out_specs=pl.BlockSpec((tb, C_pad), lambda i: (i, 0)),
        ),
        compiler_params=pltpu.CompilerParams(
            dimension_semantics=("parallel",)),  # batch tiles are independent
        cost_estimate=cost,
    )(x_in, w1_t, b1, w2_t_pad, b2_pad)


# ----------------------------------- wrapper -----------------------------------
@functools.partial(jax.jit, static_argnames=("num_classes",))
def simple_nn_forward(x, params, num_classes):
    """x: (B, input_size) f32 -> (B, num_classes) f32."""
    B, _ = x.shape
    if B <= 512:
        # One sublane-aligned tile; the <=7-row pad is negligible.
        tb = _round_up(max(B, 8), 8)
        nb = 1
        x_in = x if tb == B else jnp.pad(x, ((0, tb - B), (0, 0)))
    else:
        # Large batch: big tiles (512-2048 rows) to amortize per-grid-step
        # overhead, but keep >=2 tiles so v7x's second TensorCore stays busy.
        tb = min(2048, _round_up(pl.cdiv(B, 2), 8))
        nb = pl.cdiv(B, tb)
        x_in = x  # no jnp.pad: Pallas masks the partial edge tile
    out_pad = _mlp_forward(
        x_in, params["w1_t"], params["b1"], params["w2_t"], params["b2"], tb, nb
    )
    return out_pad[:B, :num_classes]


def init_params(key, input_size, num_classes, hidden=HIDDEN):
    """Mirrors PyTorch nn.Linear init: U(-1/sqrt(fan_in), 1/sqrt(fan_in))."""
    c_pad = _round_up(num_classes, 128)  # lane-dense fc2 output
    k1, k2, k3, k4 = jax.random.split(key, 4)

    bound1 = 1.0 / float(input_size) ** 0.5
    w1 = jax.random.uniform(k1, (hidden, input_size), jnp.float32, -bound1, bound1)
    b1 = jax.random.uniform(k2, (hidden,), jnp.float32, -bound1, bound1)

    bound2 = 1.0 / float(hidden) ** 0.5
    w2 = jax.random.uniform(k3, (num_classes, hidden), jnp.float32, -bound2, bound2)
    b2 = jax.random.uniform(k4, (num_classes,), jnp.float32, -bound2, bound2)

    # Pre-transpose to (in, out); zero-pad fc2 columns to a multiple of 128;
    # weights stored bf16 for native MXU throughput (bias adds stay f32).
    # TODO(synk): if input_size ever grows off-128 (e.g. 300-700), zero-pad it
    # to a multiple of 128 here as well for lane-dense x tiles.
    w2_t_pad = jnp.zeros((hidden, c_pad), jnp.float32).at[:, :num_classes].set(w2.T)
    b2_pad = jnp.zeros((1, c_pad), jnp.float32).at[:, :num_classes].set(b2)

    return {
        "w1_t": w1.T.astype(jnp.bfloat16),        # (input_size, 128) bf16
        "b1": b1.reshape(1, hidden),              # (1, 128) f32
        "w2_t": w2_t_pad.astype(jnp.bfloat16),    # (128, Cpad) bf16
        "b2": b2_pad,                             # (1, Cpad) f32
        # raw f32 copies for the pure-JAX reference check
        "_w1": w1, "_b1": b1, "_w2": w2, "_b2": b2,
    }


def _reference(x, params):
    h = jnp.maximum(x @ params["_w1"].T + params["_b1"], 0.0)
    return h @ params["_w2"].T + params["_b2"]


if __name__ == "__main__":
    input_size = 16
    num_classes = 10

    key = jax.random.PRNGKey(0)
    key, kp = jax.random.split(key)
    params = init_params(kp, input_size, num_classes)

    # Small single-tile path and large multi-tile (partial edge block) path.
    for batch in (2, 1300):
        key, kx = jax.random.split(key)
        x = jax.random.normal(kx, (batch, input_size), jnp.float32)
        out = simple_nn_forward(x, params, num_classes=num_classes)
        jax.block_until_ready(out)
        assert out.shape == (batch, num_classes)
        ref = _reference(x, params)
        # bf16 MXU operands vs f32 reference -> loosened tolerance.
        assert jnp.allclose(out, ref, atol=2e-2, rtol=2e-2)
    print("KERNEL_OK")
</pallas_src>

<mosaic_0001>
module attributes {stable_mosaic.version = 11 : i64} {
  func.func @_mlp_fused_kernel(%arg0: i32, %arg1: memref<8x16xf32, #tpu.memory_space<vmem>>, %arg2: memref<16x128xbf16, #tpu.memory_space<vmem>>, %arg3: memref<1x128xf32, #tpu.memory_space<vmem>>, %arg4: memref<128x128xbf16, #tpu.memory_space<vmem>>, %arg5: memref<1x128xf32, #tpu.memory_space<vmem>>, %arg6: memref<8x128xf32, #tpu.memory_space<vmem>>) attributes {dimension_semantics = [#tpu.dimension_semantics<parallel>], iteration_bounds = array<i64: 1>, scalar_prefetch = 0 : i64, scratch_operands = 0 : i64, tpu.core_type = #tpu.core_type<tc>, window_params = [{transform_indices = @transform_0, window_bounds = array<i64: 8, 16>}, {pipeline_mode = #tpu.pipeline_mode<synchronous>, transform_indices = @transform_1, window_bounds = array<i64: 16, 128>}, {pipeline_mode = #tpu.pipeline_mode<synchronous>, transform_indices = @transform_2, window_bounds = array<i64: 1, 128>}, {pipeline_mode = #tpu.pipeline_mode<synchronous>, transform_indices = @transform_3, window_bounds = array<i64: 128, 128>}, {pipeline_mode = #tpu.pipeline_mode<synchronous>, transform_indices = @transform_4, window_bounds = array<i64: 1, 128>}, {transform_indices = @transform_5, window_bounds = array<i64: 8, 128>}]} {
    %c0 = arith.constant 0 : index
    %c0_0 = arith.constant 0 : index
    %0 = vector.load %arg1[%c0, %c0_0] : memref<8x16xf32, #tpu.memory_space<vmem>>, vector<8x16xf32>
    %1 = arith.truncf %0 : vector<8x16xf32> to vector<8x16xbf16>
    %c0_1 = arith.constant 0 : index
    %c0_2 = arith.constant 0 : index
    %2 = vector.load %arg2[%c0_1, %c0_2] : memref<16x128xbf16, #tpu.memory_space<vmem>>, vector<16x128xbf16>
    %cst = arith.constant dense<0.000000e+00> : vector<8x128xf32>
    %3 = tpu.matmul %1, %2, %cst {dimension_numbers = #tpu.dot_dimension_numbers<[1], [0], [0], [1], [0, 0, 1, 1], [], []>} : vector<8x16xbf16>, vector<16x128xbf16>, vector<8x128xf32> -> vector<8x128xf32>
    %c0_3 = arith.constant 0 : index
    %c0_4 = arith.constant 0 : index
    %4 = vector.load %arg3[%c0_3, %c0_4] : memref<1x128xf32, #tpu.memory_space<vmem>>, vector<1x128xf32>
    %5 = vector.broadcast %4 : vector<1x128xf32> to vector<8x128xf32>
    %6 = arith.addf %3, %5 : vector<8x128xf32>
    %cst_5 = arith.constant 0.000000e+00 : f32
    %7 = vector.broadcast %cst_5 : f32 to vector<8x128xf32>
    %8 = arith.maximumf %6, %7 : vector<8x128xf32>
    %9 = arith.truncf %8 : vector<8x128xf32> to vector<8x128xbf16>
    %c0_6 = arith.constant 0 : index
    %c0_7 = arith.constant 0 : index
    %10 = vector.load %arg4[%c0_6, %c0_7] : memref<128x128xbf16, #tpu.memory_space<vmem>>, vector<128x128xbf16>
    %cst_8 = arith.constant dense<0.000000e+00> : vector<8x128xf32>
    %11 = tpu.matmul %9, %10, %cst_8 {dimension_numbers = #tpu.dot_dimension_numbers<[1], [0], [0], [1], [0, 0, 1, 1], [], []>} : vector<8x128xbf16>, vector<128x128xbf16>, vector<8x128xf32> -> vector<8x128xf32>
    %c0_9 = arith.constant 0 : index
    %c0_10 = arith.constant 0 : index
    %12 = vector.load %arg5[%c0_9, %c0_10] : memref<1x128xf32, #tpu.memory_space<vmem>>, vector<1x128xf32>
    %13 = vector.broadcast %12 : vector<1x128xf32> to vector<8x128xf32>
    %14 = arith.addf %11, %13 : vector<8x128xf32>
    %c0_11 = arith.constant 0 : index
    %c0_12 = arith.constant 0 : index
    %15 = vector.load %arg6[%c0_11, %c0_12] : memref<8x128xf32, #tpu.memory_space<vmem>>, vector<8x128xf32>
    tpu.vector_store %arg6[%c0_11, %c0_12], %14 {strides = array<i32>} : memref<8x128xf32, #tpu.memory_space<vmem>>, vector<8x128xf32>,
    return
  }
  func.func @transform_0(%arg0: i32) -> (i32, i32) {
    %c0_i32 = arith.constant 0 : i32
    %c0_i32_0 = arith.constant 0 : i32
    return %arg0, %c0_i32 : i32, i32
  }
  func.func @transform_1(%arg0: i32) -> (i32, i32) {
    %c0_i32 = arith.constant 0 : i32
    %c0_i32_0 = arith.constant 0 : i32
    %c0_i32_1 = arith.constant 0 : i32
    return %c0_i32, %c0_i32_0 : i32, i32
  }
  func.func @transform_2(%arg0: i32) -> (i32, i32) {
    %c0_i32 = arith.constant 0 : i32
    %c0_i32_0 = arith.constant 0 : i32
    %c0_i32_1 = arith.constant 0 : i32
    return %c0_i32, %c0_i32_0 : i32, i32
  }
  func.func @transform_3(%arg0: i32) -> (i32, i32) {
    %c0_i32 = arith.constant 0 : i32
    %c0_i32_0 = arith.constant 0 : i32
    %c0_i32_1 = arith.constant 0 : i32
    return %c0_i32, %c0_i32_0 : i32, i32
  }
  func.func @transform_4(%arg0: i32) -> (i32, i32) {
    %c0_i32 = arith.constant 0 : i32
    %c0_i32_0 = arith.constant 0 : i32
    %c0_i32_1 = arith.constant 0 : i32
    return %c0_i32, %c0_i32_0 : i32, i32
  }
  func.func @transform_5(%arg0: i32) -> (i32, i32) {
    %c0_i32 = arith.constant 0 : i32
    %c0_i32_0 = arith.constant 0 : i32
    return %arg0, %c0_i32 : i32, i32
  }
}

</mosaic_0001>

<llo_original>
// kernel: simple_nn_forward.1
$region0: #{simple_nn_forward.1}
  #allocation0 [shape = 'u32[]', space=smem, size = 0x4, offset = 0x4, fixed_abs, tag = 'smem constant byte address 0x4 - core index']
  #allocation1 [shape = 'u32[144,128]{1,0:T(1,128)}', space=vmem, size = 0x12000, scoped, tag = 'internal scratch']
  %s0 = inlined_call_operand.vmem [shape: f32[8,16], index: 0, kind: input, shape index: {}]
  %s1 = inlined_call_operand.vmem [shape: bf16[16,128], index: 1, kind: input, shape index: {}]
  %s2 = inlined_call_operand.vmem [shape: f32[1,128], index: 2, kind: input, shape index: {}]
  %s3 = inlined_call_operand.hbm [shape: bf16[128,128], index: 3, kind: input, shape index: {}]
  %s4 = inlined_call_operand.vmem [shape: f32[1,128], index: 4, kind: input, shape index: {}]
  %s5 = inlined_call_operand.vmem [shape: f32[8,128], index: 5, kind: output, shape index: {}]
  %s6 = sld [smem:[#allocation0]]
  $region34: #{simple_nn_forward.1} parent=0
    _
  %s8 = ssub.s32 1, %s6
  %s9 = scalar_select 0, %s8, %s6
  $region1: #{simple_nn_forward.1} parent=0
    #allocation2 [shape = 'u8[32768]{0}', space=vmem, size = 0x8000, scoped, tag = 'input window, operand 3, single buffered']
    #allocation3 [shape = 's32[1]{0}', space=sflag, size = 0x4, scoped, tag = 'scoped memory for simple_nn_forward.1']
    %10 = vsyncpa [#allocation3], 0
    // Predicated region
    $region2: #{simple_nn_forward.1} parent=1 // pred_check
      _
    $region3: #{simple_nn_forward.1} parent=1 // pred_check_branch
      %12 = sbr.rel (0) target = $region5
    $region4: #{simple_nn_forward.1} parent=1 // pred_region
      _
    $region5: #{simple_nn_forward.1} parent=1 // pred_fallthru
      _
    // Predicated region
    $region6: #{simple_nn_forward.1} parent=1 // pred_check
      _
    $region7: #{simple_nn_forward.1} parent=1 // pred_check_branch
      %14 = sbr.rel (0) target = $region9
    $region8: #{simple_nn_forward.1} parent=1 // pred_region
      _
    $region9: #{simple_nn_forward.1} parent=1 // pred_fallthru
      _
    // Predicated region
    $region10: #{simple_nn_forward.1} parent=1 // pred_check
      _
    $region11: #{simple_nn_forward.1} parent=1 // pred_check_branch
      %16 = sbr.rel (0) target = $region13
    $region12: #{simple_nn_forward.1} parent=1 // pred_region
      _
    $region13: #{simple_nn_forward.1} parent=1 // pred_fallthru
      _
    // Predicated region
    $region14: #{simple_nn_forward.1} parent=1 // pred_check
      _
    $region15: #{simple_nn_forward.1} parent=1 // pred_check_branch
      %18 = sbr.rel (0) target = $region17
    $region16: #{simple_nn_forward.1} parent=1 // pred_region
      %s20 = ssub.s32 1024, 1024
      %21 = vsyncadd [#allocation3], %s20
      %s22 = sshll.u32 [#allocation2], 4
      %s23 = int_to_ptr.vmem [resolvable:$true] %s22
      %28 = dma.hbm_to_vmem [thread:$0]  %s3, 1024, %s23, [#allocation3], 64, 64, 4
    $region17: #{simple_nn_forward.1} parent=1 // pred_fallthru
      _
    // Predicated region
    $region18: #{simple_nn_forward.1} parent=1 // pred_check
      _
    $region19: #{simple_nn_forward.1} parent=1 // pred_check_branch
      %30 = sbr.rel (0) target = $region21
    $region20: #{simple_nn_forward.1} parent=1 // pred_region
      _
    $region21: #{simple_nn_forward.1} parent=1 // pred_fallthru
      _
    // Predicated region
    $region22: #{simple_nn_forward.1} parent=1 // pred_check
      _
    $region23: #{simple_nn_forward.1} parent=1 // pred_check_branch
      %32 = sbr.rel (0) target = $region25
    $region24: #{simple_nn_forward.1} parent=1 // pred_region
      %33 = dma.done [#allocation3], 1024
    $region25: #{simple_nn_forward.1} parent=1 // pred_fallthru
      _
    %v35 = vld [vmem:[%s0] sm:$0xff]
    %v36 = vpack.c.bf16 %v35, %v35
    %v37 = vld [vmem:[%s1] sm:$0xf]
    %v38 = vld [vmem:[%s1 + $0x4] sm:$0xf]
    %v39 = vld [vmem:[%s2] sm:$0x1]
    %v41 = vlaneseq
    %v42 = vshrl.u32 %v41, 7
    %v43 = vsub.s32 0, %v42
    %v44 = vrot.slane %v39, %v43
    %v48 = vunpack.c.l.b16 %v37
    %v49 = vunpack.c.l.b16 %v38
    %v50 = vpack.c.b16 %v49, %v48
    %vm52 = vcmask 130048
    %v54 = vsel %vm52, %v36, 0
    %56 = vmatprep.subr.bf16.mxu0 0
    %57 = vmatpush1.bf16.msra.mxu0 %v50
    %58 = vmatprep.subr.bf16.mxu0 0
    %59 = vmatpush1.bf16.msra.mxu0 0
    %60 = vmatprep.subr.bf16.mxu0 0
    %61 = vmatpush1.bf16.msra.mxu0 0
    %62 = vmatprep.subr.bf16.mxu0 0
    %63 = vmatpush1.bf16.msra.mxu0 0
    %64 = vmatprep.subr.bf16.mxu0 0
    %65 = vmatpush1.bf16.msra.mxu0 0
    %66 = vmatprep.subr.bf16.mxu0 0
    %67 = vmatpush1.bf16.msra.mxu0 0
    %68 = vmatprep.subr.bf16.mxu0 0
    %69 = vmatpush1.bf16.msra.mxu0 0
    %70 = vmatprep.subr.bf16.mxu0 0
    %71 = vmatpush1.bf16.msra.mxu0 0
    %72 = vmatprep.subr.bf16.mxu0 0
    %73 = vmatpush1.bf16.msra.mxu0 0
    %74 = vmatprep.subr.bf16.mxu0 0
    %75 = vmatpush1.bf16.msra.mxu0 0
    %76 = vmatprep.subr.bf16.mxu0 0
    %77 = vmatpush1.bf16.msra.mxu0 0
    %78 = vmatprep.subr.bf16.mxu0 0
    %79 = vmatpush1.bf16.msra.mxu0 0
    %80 = vmatprep.subr.bf16.mxu0 0
    %81 = vmatpush1.bf16.msra.mxu0 0
    %82 = vmatprep.subr.bf16.mxu0 0
    %83 = vmatpush1.bf16.msra.mxu0 0
    %84 = vmatprep.subr.bf16.mxu0 0
    %85 = vmatpush1.bf16.msra.mxu0 0
    %86 = vmatprep.subr.bf16.mxu0 0
    %87 = vmatpush1.bf16.msra.mxu0 0
    %88 = vmatprep.mubr.bf16.mxu0 0
    %89 = vmatmul.mubr.bf16.gmra.mrb[0].mxu0 %v54
    %v90 = vpop.f32.mrb[0].mxu0
    %v91 = vadd.f32 %v44, %v90
    %v92 = vpop.f32.mrb[0].mxu0
    %v93 = vpop.f32.mrb[0].mxu0
    %v94 = vpop.f32.mrb[0].mxu0
    %95 = vdwg.mxu0
    %v96 = vmax.f32 %v91, 0.0
    %v97 = vpack.c.bf16 %v96, %v96
    %v98 = vld [vmem:[#allocation2] sm:$0xf]
    %v99 = vld [vmem:[#allocation2 + $0x4] sm:$0xf]
    %v100 = vld [vmem:[#allocation2 + $0x8] sm:$0xf]
    %v101 = vld [vmem:[#allocation2 + $0xc] sm:$0xf]
    %v102 = vld [vmem:[#allocation2 + $0x10] sm:$0xf]
    %v103 = vld [vmem:[#allocation2 + $0x14] sm:$0xf]
    %v104 = vld [vmem:[#allocation2 + $0x18] sm:$0xf]
    %v105 = vld [vmem:[#allocation2 + $0x1c] sm:$0xf]
    %v106 = vld [vmem:[#allocation2 + $0x20] sm:$0xf]
    %v107 = vld [vmem:[#allocation2 + $0x24] sm:$0xf]
    %v108 = vld [vmem:[#allocation2 + $0x28] sm:$0xf]
    %v109 = vld [vmem:[#allocation2 + $0x2c] sm:$0xf]
    %v110 = vld [vmem:[#allocation2 + $0x30] sm:$0xf]
    %v111 = vld [vmem:[#allocation2 + $0x34] sm:$0xf]
    %v112 = vld [vmem:[#allocation2 + $0x38] sm:$0xf]
    %v113 = vld [vmem:[#allocation2 + $0x3c] sm:$0xf]
    %v114 = vld [vmem:[%s4] sm:$0x1]
    %v116 = vlaneseq
    %v117 = vshrl.u32 %v116, 7
    %v118 = vsub.s32 0, %v117
    %v119 = vrot.slane %v114, %v118
    %v137 = vunpack.c.l.b16 %v98
    %v138 = vunpack.c.l.b16 %v99
    %v139 = vunpack.c.l.b16 %v100
    %v140 = vunpack.c.l.b16 %v101
    %v141 = vunpack.c.l.b16 %v102
    %v142 = vunpack.c.l.b16 %v103
    %v143 = vunpack.c.l.b16 %v104
    %v144 = vunpack.c.l.b16 %v105
    %v145 = vunpack.c.l.b16 %v106
    %v146 = vunpack.c.l.b16 %v107
    %v147 = vunpack.c.l.b16 %v108
    %v148 = vunpack.c.l.b16 %v109
    %v149 = vunpack.c.l.b16 %v110
    %v150 = vunpack.c.l.b16 %v111
    %v151 = vunpack.c.l.b16 %v112
    %v152 = vunpack.c.l.b16 %v113
    %v153 = vpack.c.b16 %v138, %v137
    %v154 = vpack.c.b16 %v140, %v139
    %v155 = vpack.c.b16 %v142, %v141
    %v156 = vpack.c.b16 %v144, %v143
    %v157 = vpack.c.b16 %v146, %v145
    %v158 = vpack.c.b16 %v148, %v147
    %v159 = vpack.c.b16 %v150, %v149
    %v160 = vpack.c.b16 %v152, %v151
    %169 = vmatprep.subr.bf16.mxu0 0
    %170 = vmatpush1.bf16.msra.mxu0 %v153
    %171 = vmatprep.subr.bf16.mxu0 0
    %172 = vmatpush1.bf16.msra.mxu0 %v154
    %173 = vmatprep.subr.bf16.mxu0 0
    %174 = vmatpush1.bf16.msra.mxu0 %v155
    %175 = vmatprep.subr.bf16.mxu0 0
    %176 = vmatpush1.bf16.msra.mxu0 %v156
    %177 = vmatprep.subr.bf16.mxu0 0
    %178 = vmatpush1.bf16.msra.mxu0 %v157
    %179 = vmatprep.subr.bf16.mxu0 0
    %180 = vmatpush1.bf16.msra.mxu0 %v158
    %181 = vmatprep.subr.bf16.mxu0 0
    %182 = vmatpush1.bf16.msra.mxu0 %v159
    %183 = vmatprep.subr.bf16.mxu0 0
    %184 = vmatpush1.bf16.msra.mxu0 %v160
    %185 = vmatprep.subr.bf16.mxu0 0
    %186 = vmatpush1.bf16.msra.mxu0 0
    %187 = vmatprep.subr.bf16.mxu0 0
    %188 = vmatpush1.bf16.msra.mxu0 0
    %189 = vmatprep.subr.bf16.mxu0 0
    %190 = vmatpush1.bf16.msra.mxu0 0
    %191 = vmatprep.subr.bf16.mxu0 0
    %192 = vmatpush1.bf16.msra.mxu0 0
    %193 = vmatprep.subr.bf16.mxu0 0
    %194 = vmatpush1.bf16.msra.mxu0 0
    %195 = vmatprep.subr.bf16.mxu0 0
    %196 = vmatpush1.bf16.msra.mxu0 0
    %197 = vmatprep.subr.bf16.mxu0 0
    %198 = vmatpush1.bf16.msra.mxu0 0
    %199 = vmatprep.subr.bf16.mxu0 0
    %200 = vmatpush1.bf16.msra.mxu0 0
    %201 = vmatprep.mubr.bf16.mxu0 0
    %202 = vmatmul.mubr.bf16.gmra.mrb[0].mxu0 %v97
    %v203 = vpop.f32.mrb[0].mxu0
    %v204 = vadd.f32 %v119, %v203
    %v205 = vpop.f32.mrb[0].mxu0
    %v206 = vpop.f32.mrb[0].mxu0
    %v207 = vpop.f32.mrb[0].mxu0
    %208 = vdwg.mxu0
    %209 = vst [vmem:[%s5] sm:$0xff] %v204
    // Predicated region
    $region26: #{simple_nn_forward.1} parent=1 // pred_check
      _
    $region27: #{simple_nn_forward.1} parent=1 // pred_check_branch
      %211 = sbr.rel (0) target = $region29
    $region28: #{simple_nn_forward.1} parent=1 // pred_region
      _
    $region29: #{simple_nn_forward.1} parent=1 // pred_fallthru
      _
    // Predicated region
    $region30: #{simple_nn_forward.1} parent=1 // pred_check
      _
    $region31: #{simple_nn_forward.1} parent=1 // pred_check_branch
      %213 = sbr.rel (0) target = $region33
    $region32: #{simple_nn_forward.1} parent=1 // pred_region
      _
    $region33: #{simple_nn_forward.1} parent=1 // pred_fallthru
      _
    %214 = vsyncpa [#allocation3], 1

</llo_original>
